<compile_context>
chip_gen: v7x
topology: tpu7x:2x2x1
jax: 0.10.0
libtpu: 0.0.40
codegen_flags: <defaults>
</compile_context>

<pallas_src>
import jax
import jax.numpy as jnp
from jax.experimental import pallas as pl
from jax.experimental.pallas import tpu as pltpu


IN_DIM = 4        # CartPole state dim (nn.Linear(4, 128)); MXU pads K internally
HID_DIM = 128
OUT_DIM = 2       # 2 actions; output stays narrow (block last dim == full array dim)
OUT_PAD = 128     # fc3 weight kept lane-dense in VMEM; result sliced to 2 cols in-kernel
TB_MAX = 4096     # max batch-tile rows per grid step (single step for typical batches)


def _cdiv(a, b):
    return -(-a // b)


def _round_up(x, m):
    return ((x + m - 1) // m) * m


def _cores_per_chip():
    """v7x has 2 TensorCores per chip (parallel grid axes shard across them)."""
    try:
        kind = jax.devices()[0].device_kind.lower()
    except Exception:
        return 1
    return 2 if ("v7" in kind or "tpu7" in kind) else 1


_CORES_PER_CHIP = _cores_per_chip()


def _select_tiles(B):
    """Pick (grid_b, tile_rows, padded_rows).

    Single tile == whole array (no row padding, no slice HLO) on single-TC chips;
    >=2 balanced tiles on v7x so both TensorCores get work; row padding < 8 per tile.
    """
    n = max(1, _cdiv(B, TB_MAX))
    if _CORES_PER_CHIP >= 2 and B >= 16:
        n = max(n, _CORES_PER_CHIP)
    if n <= 1:
        return 1, B, B                       # block == full array: any B is legal
    tb = _round_up(_cdiv(B, n), 8)           # multi-tile blocks must be sublane-aligned
    n = _cdiv(B, tb)
    return n, tb, n * tb


def dqn_kernel(x_ref, w1_ref, b1_ref, w2_ref, b2_ref, w3_ref, b3_ref, o_ref):
    """Whole MLP forward for one batch tile, entirely in VMEM.

    Weights/biases are VMEM-resident across batch tiles (constant index_maps);
    matmuls accumulate in f32 regardless of the weight/operand dtype.
    """
    cdt = w1_ref.dtype  # MXU operand dtype (bfloat16 by default, float32 for parity)
    x = x_ref[...].astype(cdt)                                  # (tb, 4); K=4 matmul
    h1 = jnp.dot(x, w1_ref[...], preferred_element_type=jnp.float32) + b1_ref[...]
    h1 = jnp.maximum(h1, 0.0).astype(cdt)
    h2 = jnp.dot(h1, w2_ref[...], preferred_element_type=jnp.float32) + b2_ref[...]
    h2 = jnp.maximum(h2, 0.0).astype(cdt)
    y = jnp.dot(h2, w3_ref[...], preferred_element_type=jnp.float32) + b3_ref[...]
    o_ref[...] = y[:, :OUT_DIM].astype(o_ref.dtype)             # narrow store (2 lanes)


def prepare_params(params, weight_dtype=jnp.bfloat16):
    """One-time weight preparation (hoisted out of the per-call path).

    Weights are stored as (in_features, out_features) so y = x @ W + b (transpose
    torch's (out, in) layout when porting real checkpoints).  fc3 is padded to 128
    lanes so the MXU matmul stays lane-dense; the kernel slices the 2 real columns.
    Default bf16 weights halve weight HBM traffic / resident VMEM; biases stay f32.
    """
    w1 = params["w1"].astype(weight_dtype)                       # (4, 128)
    b1 = params["b1"].reshape(1, HID_DIM).astype(jnp.float32)
    w2 = params["w2"].astype(weight_dtype)                       # (128, 128)
    b2 = params["b2"].reshape(1, HID_DIM).astype(jnp.float32)
    w3 = (
        jnp.zeros((HID_DIM, OUT_PAD), weight_dtype)
        .at[:, :OUT_DIM]
        .set(params["w3"].astype(weight_dtype))
    )
    b3 = (
        jnp.zeros((1, OUT_PAD), jnp.float32)
        .at[:, :OUT_DIM]
        .set(params["b3"].reshape(1, OUT_DIM).astype(jnp.float32))
    )
    return {"w1": w1, "b1": b1, "w2": w2, "b2": b2, "w3": w3, "b3": b3}


@jax.jit
def dqn_forward(x, prepared):
    """Pallas-backed forward matching DQN.forward(x).

    x: (B, 4) float32; prepared: output of prepare_params(); returns (B, 2) f32.
    """
    B = x.shape[0]
    grid_b, tb, b_pad = _select_tiles(B)

    x_in = x
    if b_pad != B:   # throughput path only: pad batch rows (zero rows, sliced off below)
        x_in = jnp.pad(x, ((0, b_pad - B), (0, 0)))

    wbytes = sum(int(v.size) * v.dtype.itemsize for v in prepared.values())
    cost = pl.CostEstimate(
        flops=2 * b_pad * (IN_DIM * HID_DIM + HID_DIM * HID_DIM + HID_DIM * OUT_PAD),
        transcendentals=0,
        bytes_accessed=int(x_in.size) * x_in.dtype.itemsize
        + wbytes
        + b_pad * OUT_DIM * 4,
    )

    const = lambda i: (0, 0)  # weights/biases: same block every grid step (resident)
    grid_spec = pltpu.PrefetchScalarGridSpec(
        num_scalar_prefetch=0,
        grid=(grid_b,),
        in_specs=[
            pl.BlockSpec((tb, IN_DIM), lambda i: (i, 0)),
            pl.BlockSpec((IN_DIM, HID_DIM), const),
            pl.BlockSpec((1, HID_DIM), const),
            pl.BlockSpec((HID_DIM, HID_DIM), const),
            pl.BlockSpec((1, HID_DIM), const),
            pl.BlockSpec((HID_DIM, OUT_PAD), const),
            pl.BlockSpec((1, OUT_PAD), const),
        ],
        out_specs=pl.BlockSpec((tb, OUT_DIM), lambda i: (i, 0)),
    )

    out = pl.pallas_call(
        dqn_kernel,
        out_shape=jax.ShapeDtypeStruct((b_pad, OUT_DIM), jnp.float32),
        grid_spec=grid_spec,
        compiler_params=pltpu.CompilerParams(dimension_semantics=("parallel",)),
        cost_estimate=cost,
    )(
        x_in,
        prepared["w1"], prepared["b1"],
        prepared["w2"], prepared["b2"],
        prepared["w3"], prepared["b3"],
    )

    if b_pad != B:
        out = out[:B]
    return out


def init_params(key):
    """Deterministic init mimicking PyTorch nn.Linear default U(-1/sqrt(in), 1/sqrt(in))."""
    ks = jax.random.split(key, 6)

    def lin(kw, kb, fan_in, fan_out):
        bound = 1.0 / jnp.sqrt(float(fan_in))
        w = jax.random.uniform(kw, (fan_in, fan_out), jnp.float32, -bound, bound)
        b = jax.random.uniform(kb, (fan_out,), jnp.float32, -bound, bound)
        return w, b

    w1, b1 = lin(ks[0], ks[1], IN_DIM, HID_DIM)
    w2, b2 = lin(ks[2], ks[3], HID_DIM, HID_DIM)
    w3, b3 = lin(ks[4], ks[5], HID_DIM, OUT_DIM)
    return {"w1": w1, "b1": b1, "w2": w2, "b2": b2, "w3": w3, "b3": b3}


def _reference_forward(x, p):
    h1 = jnp.maximum(x @ p["w1"] + p["b1"], 0.0)
    h2 = jnp.maximum(h1 @ p["w2"] + p["b2"], 0.0)
    return h2 @ p["w3"] + p["b3"]


# TODO(synk): ReplayBuffer, epsilon-greedy action(), Adam optimizer and the TD-loss
# training step are host-side / autodiff logic, not part of the forward-pass kernel.

if __name__ == "__main__":
    key = jax.random.PRNGKey(0)
    k_params, k_x1, k_x2, k_x3 = jax.random.split(key, 4)
    params = init_params(k_params)

    # One-time weight prep (hoisted out of the per-call path).
    prepared_bf16 = prepare_params(params)                        # default: bf16 MXU operands
    prepared_f32 = prepare_params(params, weight_dtype=jnp.float32)  # bit-parity path

    # Latency regime: tiny action-selection batch (B=2, state=4).
    # Single dispatch: no pad HLO, no slice HLO, one pallas_call.
    x_small = jax.random.normal(k_x1, (2, IN_DIM), jnp.float32)
    ref_small = _reference_forward(x_small, params)
    out_small_f32 = jax.block_until_ready(dqn_forward(x_small, prepared_f32))
    assert out_small_f32.shape == (2, OUT_DIM), out_small_f32.shape
    assert jnp.allclose(out_small_f32, ref_small, atol=1e-5, rtol=1e-5)
    out_small_bf16 = jax.block_until_ready(dqn_forward(x_small, prepared_bf16))
    assert out_small_bf16.shape == (2, OUT_DIM), out_small_bf16.shape
    assert jnp.allclose(out_small_bf16, ref_small, atol=3e-2)

    # Throughput regime: replay-style batch (1 tile on v5e/v6e, 2 balanced tiles on v7x).
    x_big = jax.random.normal(k_x2, (1536, IN_DIM), jnp.float32)
    ref_big = _reference_forward(x_big, params)
    out_big_f32 = jax.block_until_ready(dqn_forward(x_big, prepared_f32))
    assert out_big_f32.shape == (1536, OUT_DIM), out_big_f32.shape
    assert jnp.allclose(out_big_f32, ref_big, atol=1e-4, rtol=1e-4)
    out_big_bf16 = jax.block_until_ready(dqn_forward(x_big, prepared_bf16))
    assert jnp.allclose(out_big_bf16, ref_big, atol=3e-2)

    # Multi-tile path (row pad + row-only slice) on every generation: B > TB_MAX.
    x_multi = jax.random.normal(k_x3, (TB_MAX + 40, IN_DIM), jnp.float32)
    out_multi = jax.block_until_ready(dqn_forward(x_multi, prepared_f32))
    ref_multi = _reference_forward(x_multi, params)
    assert out_multi.shape == (TB_MAX + 40, OUT_DIM), out_multi.shape
    assert jnp.allclose(out_multi, ref_multi, atol=1e-4, rtol=1e-4)

    print("KERNEL_OK")
</pallas_src>

<mosaic_0001>
module attributes {stable_mosaic.version = 11 : i64} {
  func.func @dqn_kernel(%arg0: i32, %arg1: memref<2x4xf32, #tpu.memory_space<vmem>>, %arg2: memref<4x128xf32, #tpu.memory_space<vmem>>, %arg3: memref<1x128xf32, #tpu.memory_space<vmem>>, %arg4: memref<128x128xf32, #tpu.memory_space<vmem>>, %arg5: memref<1x128xf32, #tpu.memory_space<vmem>>, %arg6: memref<128x128xf32, #tpu.memory_space<vmem>>, %arg7: memref<1x128xf32, #tpu.memory_space<vmem>>, %arg8: memref<2x2xf32, #tpu.memory_space<vmem>>) attributes {dimension_semantics = [#tpu.dimension_semantics<parallel>], iteration_bounds = array<i64: 1>, scalar_prefetch = 0 : i64, scratch_operands = 0 : i64, tpu.core_type = #tpu.core_type<tc>, window_params = [{transform_indices = @transform_0, window_bounds = array<i64: 2, 4>}, {pipeline_mode = #tpu.pipeline_mode<synchronous>, transform_indices = @transform_1, window_bounds = array<i64: 4, 128>}, {pipeline_mode = #tpu.pipeline_mode<synchronous>, transform_indices = @transform_2, window_bounds = array<i64: 1, 128>}, {pipeline_mode = #tpu.pipeline_mode<synchronous>, transform_indices = @transform_3, window_bounds = array<i64: 128, 128>}, {pipeline_mode = #tpu.pipeline_mode<synchronous>, transform_indices = @transform_4, window_bounds = array<i64: 1, 128>}, {pipeline_mode = #tpu.pipeline_mode<synchronous>, transform_indices = @transform_5, window_bounds = array<i64: 128, 128>}, {pipeline_mode = #tpu.pipeline_mode<synchronous>, transform_indices = @transform_6, window_bounds = array<i64: 1, 128>}, {transform_indices = @transform_7, window_bounds = array<i64: 2, 2>}]} {
    %c0 = arith.constant 0 : index
    %c0_0 = arith.constant 0 : index
    %0 = vector.load %arg1[%c0, %c0_0] : memref<2x4xf32, #tpu.memory_space<vmem>>, vector<2x4xf32>
    %c0_1 = arith.constant 0 : index
    %c0_2 = arith.constant 0 : index
    %1 = vector.load %arg2[%c0_1, %c0_2] : memref<4x128xf32, #tpu.memory_space<vmem>>, vector<4x128xf32>
    %cst = arith.constant dense<0.000000e+00> : vector<2x128xf32>
    %2 = tpu.matmul %0, %1, %cst {dimension_numbers = #tpu.dot_dimension_numbers<[1], [0], [0], [1], [0, 0, 1, 1], [], []>} : vector<2x4xf32>, vector<4x128xf32>, vector<2x128xf32> -> vector<2x128xf32>
    %c0_3 = arith.constant 0 : index
    %c0_4 = arith.constant 0 : index
    %3 = vector.load %arg3[%c0_3, %c0_4] : memref<1x128xf32, #tpu.memory_space<vmem>>, vector<1x128xf32>
    %4 = vector.broadcast %3 : vector<1x128xf32> to vector<2x128xf32>
    %5 = arith.addf %2, %4 : vector<2x128xf32>
    %cst_5 = arith.constant 0.000000e+00 : f32
    %6 = vector.broadcast %cst_5 : f32 to vector<2x128xf32>
    %7 = arith.maximumf %5, %6 : vector<2x128xf32>
    %c0_6 = arith.constant 0 : index
    %c0_7 = arith.constant 0 : index
    %8 = vector.load %arg4[%c0_6, %c0_7] : memref<128x128xf32, #tpu.memory_space<vmem>>, vector<128x128xf32>
    %cst_8 = arith.constant dense<0.000000e+00> : vector<2x128xf32>
    %9 = tpu.matmul %7, %8, %cst_8 {dimension_numbers = #tpu.dot_dimension_numbers<[1], [0], [0], [1], [0, 0, 1, 1], [], []>} : vector<2x128xf32>, vector<128x128xf32>, vector<2x128xf32> -> vector<2x128xf32>
    %c0_9 = arith.constant 0 : index
    %c0_10 = arith.constant 0 : index
    %10 = vector.load %arg5[%c0_9, %c0_10] : memref<1x128xf32, #tpu.memory_space<vmem>>, vector<1x128xf32>
    %11 = vector.broadcast %10 : vector<1x128xf32> to vector<2x128xf32>
    %12 = arith.addf %9, %11 : vector<2x128xf32>
    %cst_11 = arith.constant 0.000000e+00 : f32
    %13 = vector.broadcast %cst_11 : f32 to vector<2x128xf32>
    %14 = arith.maximumf %12, %13 : vector<2x128xf32>
    %c0_12 = arith.constant 0 : index
    %c0_13 = arith.constant 0 : index
    %15 = vector.load %arg6[%c0_12, %c0_13] : memref<128x128xf32, #tpu.memory_space<vmem>>, vector<128x128xf32>
    %cst_14 = arith.constant dense<0.000000e+00> : vector<2x128xf32>
    %16 = tpu.matmul %14, %15, %cst_14 {dimension_numbers = #tpu.dot_dimension_numbers<[1], [0], [0], [1], [0, 0, 1, 1], [], []>} : vector<2x128xf32>, vector<128x128xf32>, vector<2x128xf32> -> vector<2x128xf32>
    %c0_15 = arith.constant 0 : index
    %c0_16 = arith.constant 0 : index
    %17 = vector.load %arg7[%c0_15, %c0_16] : memref<1x128xf32, #tpu.memory_space<vmem>>, vector<1x128xf32>
    %18 = vector.broadcast %17 : vector<1x128xf32> to vector<2x128xf32>
    %19 = arith.addf %16, %18 : vector<2x128xf32>
    %20 = vector.extract_strided_slice %19 {offsets = [0, 0], sizes = [2, 2], strides = [1, 1]} : vector<2x128xf32> to vector<2x2xf32>
    %c0_17 = arith.constant 0 : index
    %c0_18 = arith.constant 0 : index
    %21 = vector.load %arg8[%c0_17, %c0_18] : memref<2x2xf32, #tpu.memory_space<vmem>>, vector<2x2xf32>
    tpu.vector_store %arg8[%c0_17, %c0_18], %20 {strides = array<i32>} : memref<2x2xf32, #tpu.memory_space<vmem>>, vector<2x2xf32>,
    return
  }
  func.func @transform_0(%arg0: i32) -> (i32, i32) {
    %c0_i32 = arith.constant 0 : i32
    %c0_i32_0 = arith.constant 0 : i32
    return %arg0, %c0_i32 : i32, i32
  }
  func.func @transform_1(%arg0: i32) -> (i32, i32) {
    %c0_i32 = arith.constant 0 : i32
    %c0_i32_0 = arith.constant 0 : i32
    %c0_i32_1 = arith.constant 0 : i32
    return %c0_i32, %c0_i32_0 : i32, i32
  }
  func.func @transform_2(%arg0: i32) -> (i32, i32) {
    %c0_i32 = arith.constant 0 : i32
    %c0_i32_0 = arith.constant 0 : i32
    %c0_i32_1 = arith.constant 0 : i32
    return %c0_i32, %c0_i32_0 : i32, i32
  }
  func.func @transform_3(%arg0: i32) -> (i32, i32) {
    %c0_i32 = arith.constant 0 : i32
    %c0_i32_0 = arith.constant 0 : i32
    %c0_i32_1 = arith.constant 0 : i32
    return %c0_i32, %c0_i32_0 : i32, i32
  }
  func.func @transform_4(%arg0: i32) -> (i32, i32) {
    %c0_i32 = arith.constant 0 : i32
    %c0_i32_0 = arith.constant 0 : i32
    %c0_i32_1 = arith.constant 0 : i32
    return %c0_i32, %c0_i32_0 : i32, i32
  }
  func.func @transform_5(%arg0: i32) -> (i32, i32) {
    %c0_i32 = arith.constant 0 : i32
    %c0_i32_0 = arith.constant 0 : i32
    %c0_i32_1 = arith.constant 0 : i32
    return %c0_i32, %c0_i32_0 : i32, i32
  }
  func.func @transform_6(%arg0: i32) -> (i32, i32) {
    %c0_i32 = arith.constant 0 : i32
    %c0_i32_0 = arith.constant 0 : i32
    %c0_i32_1 = arith.constant 0 : i32
    return %c0_i32, %c0_i32_0 : i32, i32
  }
  func.func @transform_7(%arg0: i32) -> (i32, i32) {
    %c0_i32 = arith.constant 0 : i32
    %c0_i32_0 = arith.constant 0 : i32
    return %arg0, %c0_i32 : i32, i32
  }
}

</mosaic_0001>

<llo_original>
// kernel: dqn_forward.1
$region0: #{dqn_forward.1}
  #allocation0 [shape = 'u32[]', space=smem, size = 0x4, offset = 0x4, fixed_abs, tag = 'smem constant byte address 0x4 - core index']
  #allocation1 [shape = 'u32[144,128]{1,0:T(1,128)}', space=vmem, size = 0x12000, scoped, tag = 'internal scratch']
  %s0 = inlined_call_operand.hbm [shape: f32[2,4], index: 0, kind: input, shape index: {}]
  %s1 = inlined_call_operand.vmem [shape: f32[4,128], index: 1, kind: input, shape index: {}]
  %s2 = inlined_call_operand.vmem [shape: f32[1,128], index: 2, kind: input, shape index: {}]
  %s3 = inlined_call_operand.hbm [shape: f32[128,128], index: 3, kind: input, shape index: {}]
  %s4 = inlined_call_operand.vmem [shape: f32[1,128], index: 4, kind: input, shape index: {}]
  %s5 = inlined_call_operand.hbm [shape: f32[128,128], index: 5, kind: input, shape index: {}]
  %s6 = inlined_call_operand.vmem [shape: f32[1,128], index: 6, kind: input, shape index: {}]
  %s7 = inlined_call_operand.hbm [shape: f32[2,2], index: 7, kind: output, shape index: {}]
  %s8 = sld [smem:[#allocation0]]
  $region50: #{dqn_forward.1} parent=0
    _
  %s10 = ssub.s32 1, %s8
  %s11 = scalar_select 0, %s10, %s8
  $region1: #{dqn_forward.1} parent=0
    #allocation2 [shape = 'u8[1024]{0}', space=vmem, size = 0x400, scoped, tag = 'input window, operand 0, single buffered']
    #allocation3 [shape = 's32[1]{0}', space=sflag, size = 0x4, scoped, tag = 'scoped memory for dqn_forward.1']
    #allocation4 [shape = 's32[1]{0}', space=sflag, size = 0x4, scoped, tag = 'scoped memory for dqn_forward.1']
    #allocation5 [shape = 'u8[65536]{0}', space=vmem, size = 0x10000, scoped, tag = 'input window, operand 3, single buffered']
    #allocation6 [shape = 's32[1]{0}', space=sflag, size = 0x4, scoped, tag = 'scoped memory for dqn_forward.1']
    #allocation7 [shape = 'u8[65536]{0}', space=vmem, size = 0x10000, scoped, tag = 'input window, operand 5, single buffered']
    #allocation8 [shape = 'u8[1024]{0}', space=vmem, size = 0x400, scoped, tag = 'output window, operand 0, single buffered']
    %12 = vsyncpa [#allocation3], 0
    %13 = vsyncpa [#allocation6], 0
    %14 = vsyncpa [#allocation4], 0
    // Predicated region
    $region2: #{dqn_forward.1} parent=1 // pred_check
      _
    $region3: #{dqn_forward.1} parent=1 // pred_check_branch
      %16 = sbr.rel (0) target = $region5
    $region4: #{dqn_forward.1} parent=1 // pred_region
      %s18 = ssub.s32 32, 32
      %19 = vsyncadd [#allocation3], %s18
      %s21 = sshll.u32 [#allocation2], 4
      %s22 = int_to_ptr.vmem [resolvable:$true] %s21
      %24 = dma.hbm_to_vmem [thread:$0]  %s0, 32, %s22, [#allocation3]
    $region5: #{dqn_forward.1} parent=1 // pred_fallthru
      _
    // Predicated region
    $region6: #{dqn_forward.1} parent=1 // pred_check
      _
    $region7: #{dqn_forward.1} parent=1 // pred_check_branch
      %26 = sbr.rel (0) target = $region9
    $region8: #{dqn_forward.1} parent=1 // pred_region
      _
    $region9: #{dqn_forward.1} parent=1 // pred_fallthru
      _
    // Predicated region
    $region10: #{dqn_forward.1} parent=1 // pred_check
      _
    $region11: #{dqn_forward.1} parent=1 // pred_check_branch
      %28 = sbr.rel (0) target = $region13
    $region12: #{dqn_forward.1} parent=1 // pred_region
      _
    $region13: #{dqn_forward.1} parent=1 // pred_fallthru
      _
    // Predicated region
    $region14: #{dqn_forward.1} parent=1 // pred_check
      _
    $region15: #{dqn_forward.1} parent=1 // pred_check_branch
      %30 = sbr.rel (0) target = $region17
    $region16: #{dqn_forward.1} parent=1 // pred_region
      %s32 = ssub.s32 2048, 2048
      %33 = vsyncadd [#allocation6], %s32
      %s34 = sshll.u32 [#allocation5], 4
      %s35 = int_to_ptr.vmem [resolvable:$true] %s34
      %40 = dma.hbm_to_vmem [thread:$0]  %s3, 2048, %s35, [#allocation6], 128, 128, 8
    $region17: #{dqn_forward.1} parent=1 // pred_fallthru
      _
    // Predicated region
    $region18: #{dqn_forward.1} parent=1 // pred_check
      _
    $region19: #{dqn_forward.1} parent=1 // pred_check_branch
      %42 = sbr.rel (0) target = $region21
    $region20: #{dqn_forward.1} parent=1 // pred_region
      _
    $region21: #{dqn_forward.1} parent=1 // pred_fallthru
      _
    // Predicated region
    $region22: #{dqn_forward.1} parent=1 // pred_check
      _
    $region23: #{dqn_forward.1} parent=1 // pred_check_branch
      %44 = sbr.rel (0) target = $region25
    $region24: #{dqn_forward.1} parent=1 // pred_region
      %s46 = ssub.s32 2048, 2048
      %47 = vsyncadd [#allocation6], %s46
      %s48 = sshll.u32 [#allocation7], 4
      %s49 = int_to_ptr.vmem [resolvable:$true] %s48
      %54 = dma.hbm_to_vmem [thread:$0]  %s5, 2048, %s49, [#allocation6], 128, 128, 8
    $region25: #{dqn_forward.1} parent=1 // pred_fallthru
      _
    // Predicated region
    $region26: #{dqn_forward.1} parent=1 // pred_check
      _
    $region27: #{dqn_forward.1} parent=1 // pred_check_branch
      %56 = sbr.rel (0) target = $region29
    $region28: #{dqn_forward.1} parent=1 // pred_region
      _
    $region29: #{dqn_forward.1} parent=1 // pred_fallthru
      _
    // Predicated region
    $region30: #{dqn_forward.1} parent=1 // pred_check
      _
    $region31: #{dqn_forward.1} parent=1 // pred_check_branch
      %58 = sbr.rel (0) target = $region33
    $region32: #{dqn_forward.1} parent=1 // pred_region
      %59 = dma.done [#allocation3], 32
    $region33: #{dqn_forward.1} parent=1 // pred_fallthru
      _
    // Predicated region
    $region34: #{dqn_forward.1} parent=1 // pred_check
      _
    $region35: #{dqn_forward.1} parent=1 // pred_check_branch
      %61 = sbr.rel (0) target = $region37
    $region36: #{dqn_forward.1} parent=1 // pred_region
      %62 = dma.done [#allocation6], 2048
    $region37: #{dqn_forward.1} parent=1 // pred_fallthru
      _
    // Predicated region
    $region38: #{dqn_forward.1} parent=1 // pred_check
      _
    $region39: #{dqn_forward.1} parent=1 // pred_check_branch
      %64 = sbr.rel (0) target = $region41
    $region40: #{dqn_forward.1} parent=1 // pred_region
      %65 = dma.done [#allocation6], 2048
    $region41: #{dqn_forward.1} parent=1 // pred_fallthru
      _
    %v66 = vld [vmem:[#allocation2] sm:$0x3]
    %v67 = vld [vmem:[%s1] sm:$0xf]
    %v68 = vld [vmem:[%s2] sm:$0x1]
    %v70 = vlaneseq
    %v71 = vshrl.u32 %v70, 7
    %v72 = vsub.s32 0, %v71
    %v73 = vrot.slane %v68, %v72
    %vm75 = vcmask 31744
    %v77 = vsel %vm75, %v66, 0
    %vm79 = vcmask 1043456
    %v81 = vsel %vm79, %v67, 0
    %83 = vmatprep.subr.mxu0 0.0
    %84 = vmatpush1.msra.mxu0 %v81
    %85 = vmatprep.subr.mxu0 0.0
    %86 = vmatpush1.msra.mxu0 0.0
    %87 = vmatprep.subr.mxu0 0.0
    %88 = vmatpush1.msra.mxu0 0.0
    %89 = vmatprep.subr.mxu0 0.0
    %90 = vmatpush1.msra.mxu0 0.0
    %91 = vmatprep.subr.mxu0 0.0
    %92 = vmatpush1.msra.mxu0 0.0
    %93 = vmatprep.subr.mxu0 0.0
    %94 = vmatpush1.msra.mxu0 0.0
    %95 = vmatprep.subr.mxu0 0.0
    %96 = vmatpush1.msra.mxu0 0.0
    %97 = vmatprep.subr.mxu0 0.0
    %98 = vmatpush1.msra.mxu0 0.0
    %99 = vmatprep.subr.mxu0 0.0
    %100 = vmatpush1.msra.mxu0 0.0
    %101 = vmatprep.subr.mxu0 0.0
    %102 = vmatpush1.msra.mxu0 0.0
    %103 = vmatprep.subr.mxu0 0.0
    %104 = vmatpush1.msra.mxu0 0.0
    %105 = vmatprep.subr.mxu0 0.0
    %106 = vmatpush1.msra.mxu0 0.0
    %107 = vmatprep.subr.mxu0 0.0
    %108 = vmatpush1.msra.mxu0 0.0
    %109 = vmatprep.subr.mxu0 0.0
    %110 = vmatpush1.msra.mxu0 0.0
    %111 = vmatprep.subr.mxu0 0.0
    %112 = vmatpush1.msra.mxu0 0.0
    %113 = vmatprep.subr.mxu0 0.0
    %114 = vmatpush1.msra.mxu0 0.0
    %115 = vmatprep.subr.mxu0 0.0
    %116 = vmatpush1.msra.mxu0 0.0
    %117 = vmatprep.subr.mxu0 0.0
    %118 = vmatpush1.msra.mxu0 0.0
    %119 = vmatprep.subr.mxu0 0.0
    %120 = vmatpush1.msra.mxu0 0.0
    %121 = vmatprep.subr.mxu0 0.0
    %122 = vmatpush1.msra.mxu0 0.0
    %123 = vmatprep.subr.mxu0 0.0
    %124 = vmatpush1.msra.mxu0 0.0
    %125 = vmatprep.subr.mxu0 0.0
    %126 = vmatpush1.msra.mxu0 0.0
    %127 = vmatprep.subr.mxu0 0.0
    %128 = vmatpush1.msra.mxu0 0.0
    %129 = vmatprep.subr.mxu0 0.0
    %130 = vmatpush1.msra.mxu0 0.0
    %131 = vmatprep.subr.mxu0 0.0
    %132 = vmatpush1.msra.mxu0 0.0
    %133 = vmatprep.subr.mxu0 0.0
    %134 = vmatpush1.msra.mxu0 0.0
    %135 = vmatprep.subr.mxu0 0.0
    %136 = vmatpush1.msra.mxu0 0.0
    %137 = vmatprep.subr.mxu0 0.0
    %138 = vmatpush1.msra.mxu0 0.0
    %139 = vmatprep.subr.mxu0 0.0
    %140 = vmatpush1.msra.mxu0 0.0
    %141 = vmatprep.subr.mxu0 0.0
    %142 = vmatpush1.msra.mxu0 0.0
    %143 = vmatprep.subr.mxu0 0.0
    %144 = vmatpush1.msra.mxu0 0.0
    %145 = vmatprep.subr.mxu0 0.0
    %146 = vmatpush1.msra.mxu0 0.0
    %147 = vmatprep.mubr.f32.mxu0 0.0
    %148 = vmatmul.mubr.f32.gmra.mrb[0].mxu0 %v77
    %v149 = vpop.f32.mrb[0].mxu0
    %v150 = vadd.f32 %v73, %v149
    %v151 = vpop.f32.mrb[0].mxu0
    %152 = vdwg.mxu0
    %v153 = vmax.f32 %v150, 0.0
    %v154 = vld [vmem:[#allocation5] sm:$0xff]
    %v155 = vld [vmem:[#allocation5 + $0x8] sm:$0xff]
    %v156 = vld [vmem:[#allocation5 + $0x10] sm:$0xff]
    %v157 = vld [vmem:[#allocation5 + $0x18] sm:$0xff]
    %v158 = vld [vmem:[#allocation5 + $0x20] sm:$0xff]
    %v159 = vld [vmem:[#allocation5 + $0x28] sm:$0xff]
    %v160 = vld [vmem:[#allocation5 + $0x30] sm:$0xff]
    %v161 = vld [vmem:[#allocation5 + $0x38] sm:$0xff]
    %v162 = vld [vmem:[#allocation5 + $0x40] sm:$0xff]
    %v163 = vld [vmem:[#allocation5 + $0x48] sm:$0xff]
    %v164 = vld [vmem:[#allocation5 + $0x50] sm:$0xff]
    %v165 = vld [vmem:[#allocation5 + $0x58] sm:$0xff]
    %v166 = vld [vmem:[#allocation5 + $0x60] sm:$0xff]
    %v167 = vld [vmem:[#allocation5 + $0x68] sm:$0xff]
    %v168 = vld [vmem:[#allocation5 + $0x70] sm:$0xff]
    %v169 = vld [vmem:[#allocation5 + $0x78] sm:$0xff]
    %v170 = vld [vmem:[%s4] sm:$0x1]
    %v172 = vlaneseq
    %v173 = vshrl.u32 %v172, 7
    %v174 = vsub.s32 0, %v173
    %v175 = vrot.slane %v170, %v174
    %177 = vmatprep.subr.mxu0 0.0
    %178 = vmatpush1.msra.mxu0 %v154
    %179 = vmatprep.subr.mxu0 0.0
    %180 = vmatpush1.msra.mxu0 %v155
    %181 = vmatprep.subr.mxu0 0.0
    %182 = vmatpush1.msra.mxu0 %v156
    %183 = vmatprep.subr.mxu0 0.0
    %184 = vmatpush1.msra.mxu0 %v157
    %185 = vmatprep.subr.mxu0 0.0
    %186 = vmatpush1.msra.mxu0 %v158
    %187 = vmatprep.subr.mxu0 0.0
    %188 = vmatpush1.msra.mxu0 %v159
    %189 = vmatprep.subr.mxu0 0.0
    %190 = vmatpush1.msra.mxu0 %v160
    %191 = vmatprep.subr.mxu0 0.0
    %192 = vmatpush1.msra.mxu0 %v161
    %193 = vmatprep.subr.mxu0 0.0
    %194 = vmatpush1.msra.mxu0 %v162
    %195 = vmatprep.subr.mxu0 0.0
    %196 = vmatpush1.msra.mxu0 %v163
    %197 = vmatprep.subr.mxu0 0.0
    %198 = vmatpush1.msra.mxu0 %v164
    %199 = vmatprep.subr.mxu0 0.0
    %200 = vmatpush1.msra.mxu0 %v165
    %201 = vmatprep.subr.mxu0 0.0
    %202 = vmatpush1.msra.mxu0 %v166
    %203 = vmatprep.subr.mxu0 0.0
    %204 = vmatpush1.msra.mxu0 %v167
    %205 = vmatprep.subr.mxu0 0.0
    %206 = vmatpush1.msra.mxu0 %v168
    %207 = vmatprep.subr.mxu0 0.0
    %208 = vmatpush1.msra.mxu0 %v169
    %209 = vmatprep.subr.mxu0 0.0
    %210 = vmatpush1.msra.mxu0 0.0
    %211 = vmatprep.subr.mxu0 0.0
    %212 = vmatpush1.msra.mxu0 0.0
    %213 = vmatprep.subr.mxu0 0.0
    %214 = vmatpush1.msra.mxu0 0.0
    %215 = vmatprep.subr.mxu0 0.0
    %216 = vmatpush1.msra.mxu0 0.0
    %217 = vmatprep.subr.mxu0 0.0
    %218 = vmatpush1.msra.mxu0 0.0
    %219 = vmatprep.subr.mxu0 0.0
    %220 = vmatpush1.msra.mxu0 0.0
    %221 = vmatprep.subr.mxu0 0.0
    %222 = vmatpush1.msra.mxu0 0.0
    %223 = vmatprep.subr.mxu0 0.0
    %224 = vmatpush1.msra.mxu0 0.0
    %225 = vmatprep.subr.mxu0 0.0
    %226 = vmatpush1.msra.mxu0 0.0
    %227 = vmatprep.subr.mxu0 0.0
    %228 = vmatpush1.msra.mxu0 0.0
    %229 = vmatprep.subr.mxu0 0.0
    %230 = vmatpush1.msra.mxu0 0.0
    %231 = vmatprep.subr.mxu0 0.0
    %232 = vmatpush1.msra.mxu0 0.0
    %233 = vmatprep.subr.mxu0 0.0
    %234 = vmatpush1.msra.mxu0 0.0
    %235 = vmatprep.subr.mxu0 0.0
    %236 = vmatpush1.msra.mxu0 0.0
    %237 = vmatprep.subr.mxu0 0.0
    %238 = vmatpush1.msra.mxu0 0.0
    %239 = vmatprep.subr.mxu0 0.0
    %240 = vmatpush1.msra.mxu0 0.0
    %241 = vmatprep.mubr.f32.mxu0 0.0
    %242 = vmatmul.mubr.f32.gmra.mrb[0].mxu0 %v153
    %v243 = vpop.f32.mrb[0].mxu0
    %v244 = vadd.f32 %v175, %v243
    %v245 = vpop.f32.mrb[0].mxu0
    %246 = vdwg.mxu0
    %v247 = vmax.f32 %v244, 0.0
    %v248 = vld [vmem:[#allocation7] sm:$0xff]
    %v249 = vld [vmem:[#allocation7 + $0x8] sm:$0xff]
    %v250 = vld [vmem:[#allocation7 + $0x10] sm:$0xff]
    %v251 = vld [vmem:[#allocation7 + $0x18] sm:$0xff]
    %v252 = vld [vmem:[#allocation7 + $0x20] sm:$0xff]
    %v253 = vld [vmem:[#allocation7 + $0x28] sm:$0xff]
    %v254 = vld [vmem:[#allocation7 + $0x30] sm:$0xff]
    %v255 = vld [vmem:[#allocation7 + $0x38] sm:$0xff]
    %v256 = vld [vmem:[#allocation7 + $0x40] sm:$0xff]
    %v257 = vld [vmem:[#allocation7 + $0x48] sm:$0xff]
    %v258 = vld [vmem:[#allocation7 + $0x50] sm:$0xff]
    %v259 = vld [vmem:[#allocation7 + $0x58] sm:$0xff]
    %v260 = vld [vmem:[#allocation7 + $0x60] sm:$0xff]
    %v261 = vld [vmem:[#allocation7 + $0x68] sm:$0xff]
    %v262 = vld [vmem:[#allocation7 + $0x70] sm:$0xff]
    %v263 = vld [vmem:[#allocation7 + $0x78] sm:$0xff]
    %v264 = vld [vmem:[%s6] sm:$0x1]
    %v266 = vlaneseq
    %v267 = vshrl.u32 %v266, 7
    %v268 = vsub.s32 0, %v267
    %v269 = vrot.slane %v264, %v268
    %271 = vmatprep.subr.mxu0 0.0
    %272 = vmatpush1.msra.mxu0 %v248
    %273 = vmatprep.subr.mxu0 0.0
    %274 = vmatpush1.msra.mxu0 %v249
    %275 = vmatprep.subr.mxu0 0.0
    %276 = vmatpush1.msra.mxu0 %v250
    %277 = vmatprep.subr.mxu0 0.0
    %278 = vmatpush1.msra.mxu0 %v251
    %279 = vmatprep.subr.mxu0 0.0
    %280 = vmatpush1.msra.mxu0 %v252
    %281 = vmatprep.subr.mxu0 0.0
    %282 = vmatpush1.msra.mxu0 %v253
    %283 = vmatprep.subr.mxu0 0.0
    %284 = vmatpush1.msra.mxu0 %v254
    %285 = vmatprep.subr.mxu0 0.0
    %286 = vmatpush1.msra.mxu0 %v255
    %287 = vmatprep.subr.mxu0 0.0
    %288 = vmatpush1.msra.mxu0 %v256
    %289 = vmatprep.subr.mxu0 0.0
    %290 = vmatpush1.msra.mxu0 %v257
    %291 = vmatprep.subr.mxu0 0.0
    %292 = vmatpush1.msra.mxu0 %v258
    %293 = vmatprep.subr.mxu0 0.0
    %294 = vmatpush1.msra.mxu0 %v259
    %295 = vmatprep.subr.mxu0 0.0
    %296 = vmatpush1.msra.mxu0 %v260
    %297 = vmatprep.subr.mxu0 0.0
    %298 = vmatpush1.msra.mxu0 %v261
    %299 = vmatprep.subr.mxu0 0.0
    %300 = vmatpush1.msra.mxu0 %v262
    %301 = vmatprep.subr.mxu0 0.0
    %302 = vmatpush1.msra.mxu0 %v263
    %303 = vmatprep.subr.mxu0 0.0
    %304 = vmatpush1.msra.mxu0 0.0
    %305 = vmatprep.subr.mxu0 0.0
    %306 = vmatpush1.msra.mxu0 0.0
    %307 = vmatprep.subr.mxu0 0.0
    %308 = vmatpush1.msra.mxu0 0.0
    %309 = vmatprep.subr.mxu0 0.0
    %310 = vmatpush1.msra.mxu0 0.0
    %311 = vmatprep.subr.mxu0 0.0
    %312 = vmatpush1.msra.mxu0 0.0
    %313 = vmatprep.subr.mxu0 0.0
    %314 = vmatpush1.msra.mxu0 0.0
    %315 = vmatprep.subr.mxu0 0.0
    %316 = vmatpush1.msra.mxu0 0.0
    %317 = vmatprep.subr.mxu0 0.0
    %318 = vmatpush1.msra.mxu0 0.0
    %319 = vmatprep.subr.mxu0 0.0
    %320 = vmatpush1.msra.mxu0 0.0
    %321 = vmatprep.subr.mxu0 0.0
    %322 = vmatpush1.msra.mxu0 0.0
    %323 = vmatprep.subr.mxu0 0.0
    %324 = vmatpush1.msra.mxu0 0.0
    %325 = vmatprep.subr.mxu0 0.0
    %326 = vmatpush1.msra.mxu0 0.0
    %327 = vmatprep.subr.mxu0 0.0
    %328 = vmatpush1.msra.mxu0 0.0
    %329 = vmatprep.subr.mxu0 0.0
    %330 = vmatpush1.msra.mxu0 0.0
    %331 = vmatprep.subr.mxu0 0.0
    %332 = vmatpush1.msra.mxu0 0.0
    %333 = vmatprep.subr.mxu0 0.0
    %334 = vmatpush1.msra.mxu0 0.0
    %335 = vmatprep.mubr.f32.mxu0 0.0
    %336 = vmatmul.mubr.f32.gmra.mrb[0].mxu0 %v247
    %v337 = vpop.f32.mrb[0].mxu0
    %v338 = vadd.f32 %v269, %v337
    %v339 = vpop.f32.mrb[0].mxu0
    %340 = vdwg.mxu0
    %vm341 = vcmask 9216
    %342 = vst.msk [vmem:[#allocation8] sm:$0x3] %vm341, %v338
    // Predicated region
    $region42: #{dqn_forward.1} parent=1 // pred_check
      _
    $region43: #{dqn_forward.1} parent=1 // pred_check_branch
      %344 = sbr.rel (0) target = $region45
    $region44: #{dqn_forward.1} parent=1 // pred_region
      %s346 = ssub.s32 32, 32
      %347 = vsyncadd [#allocation4], %s346
      %s349 = sshll.u32 [#allocation8], 4
      %s350 = int_to_ptr.vmem [resolvable:$true] %s349
      %352 = dma.vmem_to_hbm [thread:$0]  %s350, 32, %s7, [#allocation4]
    $region45: #{dqn_forward.1} parent=1 // pred_fallthru
      _
    // Predicated region
    $region46: #{dqn_forward.1} parent=1 // pred_check
      _
    $region47: #{dqn_forward.1} parent=1 // pred_check_branch
      %354 = sbr.rel (0) target = $region49
    $region48: #{dqn_forward.1} parent=1 // pred_region
      %355 = dma.done [#allocation4], 32
    $region49: #{dqn_forward.1} parent=1 // pred_fallthru
      _
    %356 = vsyncpa [#allocation3], 1
    %357 = vsyncpa [#allocation6], 1
    %358 = vsyncpa [#allocation4], 1

</llo_original>
